<compile_context>
chip_gen: v7x
topology: tpu7x:2x2x1
jax: 0.10.0
libtpu: 0.0.40
codegen_flags: <defaults>
</compile_context>

<pallas_src>
import functools

import jax
import jax.numpy as jnp
from jax.experimental import pallas as pl
from jax.experimental.pallas import tpu as pltpu


def residual_block_kernel(x_ref, w1_ref, b1_ref, a1_ref, w2_ref, b2_ref,
                          out_ref, stk_ref, *, width):
    """Fused SRGAN ResidualBlock for one batch element.

    x_ref   : (1, C, H*W)  input, channel-major, flat spatial (f32)
    w{1,2}  : (C, 9*C)     bf16 conv weights, columns ordered (dy*3+dx)*C + ci,
                           BN scale pre-folded in.
    b{1,2}  : (C, 1)       folded BatchNorm shift (f32)
    a1      : (C, 1)       PReLU per-channel slope (f32)
    out_ref : (1, C, H*W)
    stk_ref : (9*C, H*W)   bf16 scratch, reused by both convs (im2col operand)
    """
    c, hw = x_ref.shape[1], x_ref.shape[2]

    x = x_ref[0]                                    # (C, HW) f32, also residual

    # ---- border masks, generated in-kernel (no mask DMA) --------------------
    q = jax.lax.broadcasted_iota(jnp.int32, (c, hw), 1)
    col = q % width
    colL = col != 0                  # valid when reading column x-1  (dx == 0)
    colR = col != width - 1          # valid when reading column x+1  (dx == 2)
    rowT = q >= width                # valid when reading row    y-1  (dy == 0)
    rowB = q < hw - width            # valid when reading row    y+1  (dy == 2)

    def lroll(v, s):
        """Cyclic lane roll such that result[q] = v[(q + (-s)) mod HW]."""
        s = s % hw                                  # static, normalizes negatives
        return v if s == 0 else pltpu.roll(v, s, axis=1)

    def conv3x3(inp_f32, w_ref):
        """3x3 / stride 1 / pad 1 conv as ONE MXU matmul with K = 9*C."""
        for dx in range(3):
            # column shift: cs[q] = inp[q + dx - 1], masked at the side borders
            cs = lroll(inp_f32, 1 - dx)
            if dx == 0:
                cs = jnp.where(colL, cs, 0.0)
            elif dx == 2:
                cs = jnp.where(colR, cs, 0.0)
            for dy in range(3):
                # row shift: rs[q] = cs[q + (dy-1)*W], masked at top/bottom rows
                rs = lroll(cs, (1 - dy) * width)
                if dy == 0:
                    rs = jnp.where(rowT, rs, 0.0)
                elif dy == 2:
                    rs = jnp.where(rowB, rs, 0.0)
                t = dy * 3 + dx
                stk_ref[t * c:(t + 1) * c, :] = rs.astype(jnp.bfloat16)
        # (C, 9C) @ (9C, HW) -> (C, HW), bf16 operands, f32 accumulation.
        return jnp.dot(w_ref[...], stk_ref[...],
                       preferred_element_type=jnp.float32)

    # block1: conv + BN (scale folded in weights, shift here) + PReLU, in f32.
    y = conv3x3(x, w1_ref) + b1_ref[...]
    y = jnp.where(y > 0, y, y * a1_ref[...])

    # block2: conv + BN; residual add fused into the single lane-dense store.
    out_ref[0] = (conv3x3(y, w2_ref) + b2_ref[...] + x).astype(out_ref.dtype)


def _prep_conv_bn(w, gamma, beta, mean, var, eps=1e-5):
    """Fold eval-mode BatchNorm into the conv. Returns (wstack_bf16, shift)."""
    scale = gamma / jnp.sqrt(var + eps)                       # (C,)
    shift = beta - mean * scale                               # (C,)
    c = w.shape[0]
    w = w * scale[:, None, None, None]                        # fold scale (f32)
    # (Cout, Cin, 3, 3) -> (Cout, 3, 3, Cin) -> (Cout, 9*Cin);
    # column index = (dy*3 + dx)*C + ci, matching the stacked im2col operand.
    wstack = jnp.transpose(w, (0, 2, 3, 1)).reshape(c, 9 * c)
    return wstack.astype(jnp.bfloat16), shift.reshape(c, 1).astype(jnp.float32)


@functools.lru_cache(maxsize=None)
def _vmem_limit_bytes() -> int:
    """Per-generation VMEM limit: 75% of physical, never below 48 MiB."""
    default = 48 * 1024 * 1024                    # safe on v7x (64 MiB physical)
    try:
        cap = int(pltpu.get_tpu_info().vmem_capacity_bytes)
        return max(default, (cap * 3) // 4)       # 96 MiB on v5e/v6e (128 MiB)
    except Exception:
        return default


@jax.jit
def residual_block(x_nchw, w1, g1, be1, rm1, rv1, alpha1,
                   w2, g2, be2, rm2, rv2):
    """SRGAN ResidualBlock forward (eval-mode BN). x: (N, C, H, W) float32."""
    n, c, h, w = x_nchw.shape
    hw = h * w
    xflat = x_nchw.reshape(n, c, hw)                          # free reshape

    w1s, b1 = _prep_conv_bn(w1, g1, be1, rm1, rv1)
    w2s, b2 = _prep_conv_bn(w2, g2, be2, rm2, rv2)
    a1 = alpha1.reshape(c, 1).astype(jnp.float32)

    # Advisory cost hint for the XLA scheduler around the custom call.
    flops = 2 * (2 * 9 * c * c * hw) * n                      # two convs
    bytes_accessed = 2 * n * c * hw * 4 + 2 * 9 * c * c * 2 + 3 * c * 4

    full2d = lambda i: (0, 0)
    out = pl.pallas_call(
        functools.partial(residual_block_kernel, width=w),
        out_shape=jax.ShapeDtypeStruct((n, c, hw), jnp.float32),
        grid=(n,),
        in_specs=[
            pl.BlockSpec((1, c, hw), lambda i: (i, 0, 0)),    # x (lane-dense)
            pl.BlockSpec((c, 9 * c), full2d),                 # w1 (C, 9C)
            pl.BlockSpec((c, 1), full2d),                     # b1
            pl.BlockSpec((c, 1), full2d),                     # alpha1
            pl.BlockSpec((c, 9 * c), full2d),                 # w2 (C, 9C)
            pl.BlockSpec((c, 1), full2d),                     # b2
        ],
        out_specs=pl.BlockSpec((1, c, hw), lambda i: (i, 0, 0)),
        scratch_shapes=[pltpu.VMEM((9 * c, hw), jnp.bfloat16)],
        compiler_params=pltpu.CompilerParams(
            # No cross-iteration carry -> the batch axis may shard across the
            # two TensorCores on v7x; harmless on v5e/v6e.
            dimension_semantics=("parallel",),
            vmem_limit_bytes=_vmem_limit_bytes(),
        ),
        cost_estimate=pl.CostEstimate(
            flops=flops, transcendentals=0, bytes_accessed=bytes_accessed),
    )(xflat, w1s, b1, a1, w2s, b2)
    return out.reshape(n, c, h, w)


# ------------------------- pure-JAX reference (NCHW) -------------------------
def _reference(x, w1, g1, be1, rm1, rv1, a1, w2, g2, be2, rm2, rv2, eps=1e-5):
    def conv(v, wgt):
        return jax.lax.conv_general_dilated(
            v, wgt, window_strides=(1, 1), padding=((1, 1), (1, 1)),
            dimension_numbers=("NCHW", "OIHW", "NCHW"))

    def bn(v, g, b, m, var):
        c = v.shape[1]
        sh = (1, c, 1, 1)
        return (v - m.reshape(sh)) / jnp.sqrt(var.reshape(sh) + eps) \
            * g.reshape(sh) + b.reshape(sh)

    y = conv(x, w1)
    y = bn(y, g1, be1, rm1, rv1)
    y = jnp.where(y > 0, y, a1.reshape(1, -1, 1, 1) * y)           # PReLU
    z = conv(y, w2)
    z = bn(z, g2, be2, rm2, rv2)
    return z + x


if __name__ == "__main__":
    def run_case(case_idx, n, c, h, w):
        key = jax.random.fold_in(jax.random.PRNGKey(0), case_idx)
        ks = jax.random.split(key, 12)

        x = jax.random.normal(ks[0], (n, c, h, w), jnp.float32)

        # block1 params (conv + BN + PReLU)
        w1 = 0.1 * jax.random.normal(ks[1], (c, c, 3, 3), jnp.float32)
        g1 = 1.0 + 0.1 * jax.random.normal(ks[2], (c,), jnp.float32)
        be1 = 0.1 * jax.random.normal(ks[3], (c,), jnp.float32)
        rm1 = 0.1 * jax.random.normal(ks[4], (c,), jnp.float32)
        rv1 = jax.random.uniform(ks[5], (c,), jnp.float32, 0.5, 1.5)
        alpha1 = 0.25 + 0.05 * jax.random.normal(ks[6], (c,), jnp.float32)

        # block2 params (conv + BN, no activation)
        w2 = 0.1 * jax.random.normal(ks[7], (c, c, 3, 3), jnp.float32)
        g2 = 1.0 + 0.1 * jax.random.normal(ks[8], (c,), jnp.float32)
        be2 = 0.1 * jax.random.normal(ks[9], (c,), jnp.float32)
        rm2 = 0.1 * jax.random.normal(ks[10], (c,), jnp.float32)
        rv2 = jax.random.uniform(ks[11], (c,), jnp.float32, 0.5, 1.5)

        out = residual_block(x, w1, g1, be1, rm1, rv1, alpha1,
                             w2, g2, be2, rm2, rv2)
        out = jax.block_until_ready(out)

        ref = _reference(x, w1, g1, be1, rm1, rv1, alpha1,
                         w2, g2, be2, rm2, rv2)
        assert out.shape == (n, c, h, w)
        err = jnp.max(jnp.abs(out - ref))
        # bf16 MXU operands -> looser tolerance than a pure-f32 pipeline.
        assert jnp.allclose(out, ref, atol=5e-2, rtol=5e-2), \
            f"case {case_idx}: max abs err = {err}"

    run_case(0, 2, 8, 16, 16)   # square image
    run_case(1, 1, 8, 8, 16)    # non-square (H != W): exercises row/col masks

    print("KERNEL_OK")
</pallas_src>

<mosaic_0001>
module attributes {stable_mosaic.version = 11 : i64} {
  func.func @residual_block_kernel(%arg0: i32, %arg1: memref<1x8x256xf32, #tpu.memory_space<vmem>>, %arg2: memref<8x72xbf16, #tpu.memory_space<vmem>>, %arg3: memref<8x1xf32, #tpu.memory_space<vmem>>, %arg4: memref<8x1xf32, #tpu.memory_space<vmem>>, %arg5: memref<8x72xbf16, #tpu.memory_space<vmem>>, %arg6: memref<8x1xf32, #tpu.memory_space<vmem>>, %arg7: memref<1x8x256xf32, #tpu.memory_space<vmem>>, %arg8: memref<72x256xbf16, #tpu.memory_space<vmem>>) attributes {dimension_semantics = [#tpu.dimension_semantics<parallel>], iteration_bounds = array<i64: 2>, scalar_prefetch = 0 : i64, scratch_operands = 1 : i64, tpu.core_type = #tpu.core_type<tc>, window_params = [{transform_indices = @transform_0, window_bounds = array<i64: 1, 8, 256>}, {pipeline_mode = #tpu.pipeline_mode<synchronous>, transform_indices = @transform_1, window_bounds = array<i64: 8, 72>}, {pipeline_mode = #tpu.pipeline_mode<synchronous>, transform_indices = @transform_2, window_bounds = array<i64: 8, 1>}, {pipeline_mode = #tpu.pipeline_mode<synchronous>, transform_indices = @transform_3, window_bounds = array<i64: 8, 1>}, {pipeline_mode = #tpu.pipeline_mode<synchronous>, transform_indices = @transform_4, window_bounds = array<i64: 8, 72>}, {pipeline_mode = #tpu.pipeline_mode<synchronous>, transform_indices = @transform_5, window_bounds = array<i64: 8, 1>}, {transform_indices = @transform_6, window_bounds = array<i64: 1, 8, 256>}]} {
    %c0 = arith.constant 0 : index
    %c0_0 = arith.constant 0 : index
    %c0_1 = arith.constant 0 : index
    %0 = vector.load %arg1[%c0, %c0_0, %c0_1] : memref<1x8x256xf32, #tpu.memory_space<vmem>>, vector<1x8x256xf32>
    %1 = vector.shape_cast %0 : vector<1x8x256xf32> to vector<8x256xf32>
    %2 = tpu.iota {dimensions = array<i32: 1>} : vector<8x256xi32>
    %c16_i32 = arith.constant 16 : i32
    %c0_i32 = arith.constant 0 : i32
    %3 = arith.cmpi eq, %c16_i32, %c0_i32 : i32
    %c1_i32 = arith.constant 1 : i32
    %4 = arith.select %3, %c1_i32, %c16_i32 : i32
    %5 = vector.broadcast %4 : i32 to vector<8x256xi32>
    %6 = arith.remsi %2, %5 : vector<8x256xi32>
    %c0_i32_2 = arith.constant 0 : i32
    %7 = vector.broadcast %c0_i32_2 : i32 to vector<8x256xi32>
    %8 = arith.cmpi ne, %6, %7 : vector<8x256xi32>
    %c0_i32_3 = arith.constant 0 : i32
    %9 = vector.broadcast %c0_i32_3 : i32 to vector<8x256xi32>
    %10 = arith.cmpi slt, %6, %9 : vector<8x256xi32>
    %c0_i32_4 = arith.constant 0 : i32
    %11 = arith.cmpi slt, %4, %c0_i32_4 : i32
    %12 = vector.broadcast %11 : i1 to vector<8x256xi1>
    %13 = vector.broadcast %12 : vector<8x256xi1> to vector<8x256xi1>
    %14 = arith.xori %10, %13 : vector<8x256xi1>
    %15 = arith.andi %14, %8 : vector<8x256xi1>
    %16 = vector.broadcast %4 : i32 to vector<8x256xi32>
    %17 = arith.addi %6, %16 : vector<8x256xi32>
    %18 = arith.select %15, %17, %6 : vector<8x256xi1>, vector<8x256xi32>
    %c0_i32_5 = arith.constant 0 : i32
    %19 = vector.broadcast %c0_i32_5 : i32 to vector<8x256xi32>
    %20 = arith.cmpi ne, %18, %19 : vector<8x256xi32>
    %c15_i32 = arith.constant 15 : i32
    %21 = vector.broadcast %c15_i32 : i32 to vector<8x256xi32>
    %22 = arith.cmpi ne, %18, %21 : vector<8x256xi32>
    %c16_i32_6 = arith.constant 16 : i32
    %23 = vector.broadcast %c16_i32_6 : i32 to vector<8x256xi32>
    %24 = arith.cmpi sge, %2, %23 : vector<8x256xi32>
    %c240_i32 = arith.constant 240 : i32
    %25 = vector.broadcast %c240_i32 : i32 to vector<8x256xi32>
    %26 = arith.cmpi slt, %2, %25 : vector<8x256xi32>
    %c1_i32_7 = arith.constant 1 : i32
    %27 = tpu.dynamic_rotate %1 by %c1_i32_7 dim 1 : vector<8x256xf32>, i32 -> vector<8x256xf32>
    %cst = arith.constant 0.000000e+00 : f32
    %28 = vector.broadcast %cst : f32 to vector<8x256xf32>
    %29 = arith.select %20, %27, %28 : vector<8x256xi1>, vector<8x256xf32>
    %c16_i32_8 = arith.constant 16 : i32
    %30 = tpu.dynamic_rotate %29 by %c16_i32_8 dim 1 : vector<8x256xf32>, i32 -> vector<8x256xf32>
    %cst_9 = arith.constant 0.000000e+00 : f32
    %31 = vector.broadcast %cst_9 : f32 to vector<8x256xf32>
    %32 = arith.select %24, %30, %31 : vector<8x256xi1>, vector<8x256xf32>
    %33 = arith.truncf %32 : vector<8x256xf32> to vector<8x256xbf16>
    %c0_10 = arith.constant 0 : index
    %c0_11 = arith.constant 0 : index
    %34 = vector.load %arg8[%c0_10, %c0_11] : memref<72x256xbf16, #tpu.memory_space<vmem>>, vector<8x256xbf16>
    tpu.vector_store %arg8[%c0_10, %c0_11], %33 {strides = array<i32>} : memref<72x256xbf16, #tpu.memory_space<vmem>>, vector<8x256xbf16>,
    %35 = arith.truncf %29 : vector<8x256xf32> to vector<8x256xbf16>
    %c24 = arith.constant 24 : index
    %c0_12 = arith.constant 0 : index
    %36 = vector.load %arg8[%c24, %c0_12] : memref<72x256xbf16, #tpu.memory_space<vmem>>, vector<8x256xbf16>
    tpu.vector_store %arg8[%c24, %c0_12], %35 {strides = array<i32>} : memref<72x256xbf16, #tpu.memory_space<vmem>>, vector<8x256xbf16>,
    %c240_i32_13 = arith.constant 240 : i32
    %37 = tpu.dynamic_rotate %29 by %c240_i32_13 dim 1 : vector<8x256xf32>, i32 -> vector<8x256xf32>
    %cst_14 = arith.constant 0.000000e+00 : f32
    %38 = vector.broadcast %cst_14 : f32 to vector<8x256xf32>
    %39 = arith.select %26, %37, %38 : vector<8x256xi1>, vector<8x256xf32>
    %40 = arith.truncf %39 : vector<8x256xf32> to vector<8x256xbf16>
    %c48 = arith.constant 48 : index
    %c0_15 = arith.constant 0 : index
    %41 = vector.load %arg8[%c48, %c0_15] : memref<72x256xbf16, #tpu.memory_space<vmem>>, vector<8x256xbf16>
    tpu.vector_store %arg8[%c48, %c0_15], %40 {strides = array<i32>} : memref<72x256xbf16, #tpu.memory_space<vmem>>, vector<8x256xbf16>,
    %c16_i32_16 = arith.constant 16 : i32
    %42 = tpu.dynamic_rotate %1 by %c16_i32_16 dim 1 : vector<8x256xf32>, i32 -> vector<8x256xf32>
    %cst_17 = arith.constant 0.000000e+00 : f32
    %43 = vector.broadcast %cst_17 : f32 to vector<8x256xf32>
    %44 = arith.select %24, %42, %43 : vector<8x256xi1>, vector<8x256xf32>
    %45 = arith.truncf %44 : vector<8x256xf32> to vector<8x256xbf16>
    %c8 = arith.constant 8 : index
    %c0_18 = arith.constant 0 : index
    %46 = vector.load %arg8[%c8, %c0_18] : memref<72x256xbf16, #tpu.memory_space<vmem>>, vector<8x256xbf16>
    tpu.vector_store %arg8[%c8, %c0_18], %45 {strides = array<i32>} : memref<72x256xbf16, #tpu.memory_space<vmem>>, vector<8x256xbf16>,
    %47 = arith.truncf %1 : vector<8x256xf32> to vector<8x256xbf16>
    %c32 = arith.constant 32 : index
    %c0_19 = arith.constant 0 : index
    %48 = vector.load %arg8[%c32, %c0_19] : memref<72x256xbf16, #tpu.memory_space<vmem>>, vector<8x256xbf16>
    tpu.vector_store %arg8[%c32, %c0_19], %47 {strides = array<i32>} : memref<72x256xbf16, #tpu.memory_space<vmem>>, vector<8x256xbf16>,
    %c240_i32_20 = arith.constant 240 : i32
    %49 = tpu.dynamic_rotate %1 by %c240_i32_20 dim 1 : vector<8x256xf32>, i32 -> vector<8x256xf32>
    %cst_21 = arith.constant 0.000000e+00 : f32
    %50 = vector.broadcast %cst_21 : f32 to vector<8x256xf32>
    %51 = arith.select %26, %49, %50 : vector<8x256xi1>, vector<8x256xf32>
    %52 = arith.truncf %51 : vector<8x256xf32> to vector<8x256xbf16>
    %c56 = arith.constant 56 : index
    %c0_22 = arith.constant 0 : index
    %53 = vector.load %arg8[%c56, %c0_22] : memref<72x256xbf16, #tpu.memory_space<vmem>>, vector<8x256xbf16>
    tpu.vector_store %arg8[%c56, %c0_22], %52 {strides = array<i32>} : memref<72x256xbf16, #tpu.memory_space<vmem>>, vector<8x256xbf16>,
    %c255_i32 = arith.constant 255 : i32
    %54 = tpu.dynamic_rotate %1 by %c255_i32 dim 1 : vector<8x256xf32>, i32 -> vector<8x256xf32>
    %cst_23 = arith.constant 0.000000e+00 : f32
    %55 = vector.broadcast %cst_23 : f32 to vector<8x256xf32>
    %56 = arith.select %22, %54, %55 : vector<8x256xi1>, vector<8x256xf32>
    %c16_i32_24 = arith.constant 16 : i32
    %57 = tpu.dynamic_rotate %56 by %c16_i32_24 dim 1 : vector<8x256xf32>, i32 -> vector<8x256xf32>
    %cst_25 = arith.constant 0.000000e+00 : f32
    %58 = vector.broadcast %cst_25 : f32 to vector<8x256xf32>
    %59 = arith.select %24, %57, %58 : vector<8x256xi1>, vector<8x256xf32>
    %60 = arith.truncf %59 : vector<8x256xf32> to vector<8x256xbf16>
    %c16 = arith.constant 16 : index
    %c0_26 = arith.constant 0 : index
    %61 = vector.load %arg8[%c16, %c0_26] : memref<72x256xbf16, #tpu.memory_space<vmem>>, vector<8x256xbf16>
    tpu.vector_store %arg8[%c16, %c0_26], %60 {strides = array<i32>} : memref<72x256xbf16, #tpu.memory_space<vmem>>, vector<8x256xbf16>,
    %62 = arith.truncf %56 : vector<8x256xf32> to vector<8x256xbf16>
    %c40 = arith.constant 40 : index
    %c0_27 = arith.constant 0 : index
    %63 = vector.load %arg8[%c40, %c0_27] : memref<72x256xbf16, #tpu.memory_space<vmem>>, vector<8x256xbf16>
    tpu.vector_store %arg8[%c40, %c0_27], %62 {strides = array<i32>} : memref<72x256xbf16, #tpu.memory_space<vmem>>, vector<8x256xbf16>,
    %c240_i32_28 = arith.constant 240 : i32
    %64 = tpu.dynamic_rotate %56 by %c240_i32_28 dim 1 : vector<8x256xf32>, i32 -> vector<8x256xf32>
    %cst_29 = arith.constant 0.000000e+00 : f32
    %65 = vector.broadcast %cst_29 : f32 to vector<8x256xf32>
    %66 = arith.select %26, %64, %65 : vector<8x256xi1>, vector<8x256xf32>
    %67 = arith.truncf %66 : vector<8x256xf32> to vector<8x256xbf16>
    %c64 = arith.constant 64 : index
    %c0_30 = arith.constant 0 : index
    %68 = vector.load %arg8[%c64, %c0_30] : memref<72x256xbf16, #tpu.memory_space<vmem>>, vector<8x256xbf16>
    tpu.vector_store %arg8[%c64, %c0_30], %67 {strides = array<i32>} : memref<72x256xbf16, #tpu.memory_space<vmem>>, vector<8x256xbf16>,
    %c0_31 = arith.constant 0 : index
    %c0_32 = arith.constant 0 : index
    %69 = vector.load %arg2[%c0_31, %c0_32] : memref<8x72xbf16, #tpu.memory_space<vmem>>, vector<8x72xbf16>
    %c0_33 = arith.constant 0 : index
    %c0_34 = arith.constant 0 : index
    %70 = vector.load %arg8[%c0_33, %c0_34] : memref<72x256xbf16, #tpu.memory_space<vmem>>, vector<72x256xbf16>
    %cst_35 = arith.constant dense<0.000000e+00> : vector<8x256xf32>
    %71 = tpu.matmul %69, %70, %cst_35 {dimension_numbers = #tpu.dot_dimension_numbers<[1], [0], [0], [1], [0, 0, 1, 1], [], []>} : vector<8x72xbf16>, vector<72x256xbf16>, vector<8x256xf32> -> vector<8x256xf32>
    %c0_36 = arith.constant 0 : index
    %c0_37 = arith.constant 0 : index
    %72 = vector.load %arg3[%c0_36, %c0_37] : memref<8x1xf32, #tpu.memory_space<vmem>>, vector<8x1xf32>
    %73 = vector.broadcast %72 : vector<8x1xf32> to vector<8x256xf32>
    %74 = arith.addf %71, %73 : vector<8x256xf32>
    %cst_38 = arith.constant 0.000000e+00 : f32
    %75 = vector.broadcast %cst_38 : f32 to vector<8x256xf32>
    %76 = arith.cmpf ogt, %74, %75 : vector<8x256xf32>
    %c0_39 = arith.constant 0 : index
    %c0_40 = arith.constant 0 : index
    %77 = vector.load %arg4[%c0_39, %c0_40] : memref<8x1xf32, #tpu.memory_space<vmem>>, vector<8x1xf32>
    %78 = vector.broadcast %77 : vector<8x1xf32> to vector<8x256xf32>
    %79 = arith.mulf %74, %78 : vector<8x256xf32>
    %80 = arith.select %76, %74, %79 : vector<8x256xi1>, vector<8x256xf32>
    %c1_i32_41 = arith.constant 1 : i32
    %81 = tpu.dynamic_rotate %80 by %c1_i32_41 dim 1 : vector<8x256xf32>, i32 -> vector<8x256xf32>
    %cst_42 = arith.constant 0.000000e+00 : f32
    %82 = vector.broadcast %cst_42 : f32 to vector<8x256xf32>
    %83 = arith.select %20, %81, %82 : vector<8x256xi1>, vector<8x256xf32>
    %c16_i32_43 = arith.constant 16 : i32
    %84 = tpu.dynamic_rotate %83 by %c16_i32_43 dim 1 : vector<8x256xf32>, i32 -> vector<8x256xf32>
    %cst_44 = arith.constant 0.000000e+00 : f32
    %85 = vector.broadcast %cst_44 : f32 to vector<8x256xf32>
    %86 = arith.select %24, %84, %85 : vector<8x256xi1>, vector<8x256xf32>
    %87 = arith.truncf %86 : vector<8x256xf32> to vector<8x256xbf16>
    %c0_45 = arith.constant 0 : index
    %c0_46 = arith.constant 0 : index
    %88 = vector.load %arg8[%c0_45, %c0_46] : memref<72x256xbf16, #tpu.memory_space<vmem>>, vector<8x256xbf16>
    tpu.vector_store %arg8[%c0_45, %c0_46], %87 {strides = array<i32>} : memref<72x256xbf16, #tpu.memory_space<vmem>>, vector<8x256xbf16>,
    %89 = arith.truncf %83 : vector<8x256xf32> to vector<8x256xbf16>
    %c24_47 = arith.constant 24 : index
    %c0_48 = arith.constant 0 : index
    %90 = vector.load %arg8[%c24_47, %c0_48] : memref<72x256xbf16, #tpu.memory_space<vmem>>, vector<8x256xbf16>
    tpu.vector_store %arg8[%c24_47, %c0_48], %89 {strides = array<i32>} : memref<72x256xbf16, #tpu.memory_space<vmem>>, vector<8x256xbf16>,
    %c240_i32_49 = arith.constant 240 : i32
    %91 = tpu.dynamic_rotate %83 by %c240_i32_49 dim 1 : vector<8x256xf32>, i32 -> vector<8x256xf32>
    %cst_50 = arith.constant 0.000000e+00 : f32
    %92 = vector.broadcast %cst_50 : f32 to vector<8x256xf32>
    %93 = arith.select %26, %91, %92 : vector<8x256xi1>, vector<8x256xf32>
    %94 = arith.truncf %93 : vector<8x256xf32> to vector<8x256xbf16>
    %c48_51 = arith.constant 48 : index
    %c0_52 = arith.constant 0 : index
    %95 = vector.load %arg8[%c48_51, %c0_52] : memref<72x256xbf16, #tpu.memory_space<vmem>>, vector<8x256xbf16>
    tpu.vector_store %arg8[%c48_51, %c0_52], %94 {strides = array<i32>} : memref<72x256xbf16, #tpu.memory_space<vmem>>, vector<8x256xbf16>,
    %c16_i32_53 = arith.constant 16 : i32
    %96 = tpu.dynamic_rotate %80 by %c16_i32_53 dim 1 : vector<8x256xf32>, i32 -> vector<8x256xf32>
    %cst_54 = arith.constant 0.000000e+00 : f32
    %97 = vector.broadcast %cst_54 : f32 to vector<8x256xf32>
    %98 = arith.select %24, %96, %97 : vector<8x256xi1>, vector<8x256xf32>
    %99 = arith.truncf %98 : vector<8x256xf32> to vector<8x256xbf16>
    %c8_55 = arith.constant 8 : index
    %c0_56 = arith.constant 0 : index
    %100 = vector.load %arg8[%c8_55, %c0_56] : memref<72x256xbf16, #tpu.memory_space<vmem>>, vector<8x256xbf16>
    tpu.vector_store %arg8[%c8_55, %c0_56], %99 {strides = array<i32>} : memref<72x256xbf16, #tpu.memory_space<vmem>>, vector<8x256xbf16>,
    %101 = arith.truncf %80 : vector<8x256xf32> to vector<8x256xbf16>
    %c32_57 = arith.constant 32 : index
    %c0_58 = arith.constant 0 : index
    %102 = vector.load %arg8[%c32_57, %c0_58] : memref<72x256xbf16, #tpu.memory_space<vmem>>, vector<8x256xbf16>
    tpu.vector_store %arg8[%c32_57, %c0_58], %101 {strides = array<i32>} : memref<72x256xbf16, #tpu.memory_space<vmem>>, vector<8x256xbf16>,
    %c240_i32_59 = arith.constant 240 : i32
    %103 = tpu.dynamic_rotate %80 by %c240_i32_59 dim 1 : vector<8x256xf32>, i32 -> vector<8x256xf32>
    %cst_60 = arith.constant 0.000000e+00 : f32
    %104 = vector.broadcast %cst_60 : f32 to vector<8x256xf32>
    %105 = arith.select %26, %103, %104 : vector<8x256xi1>, vector<8x256xf32>
    %106 = arith.truncf %105 : vector<8x256xf32> to vector<8x256xbf16>
    %c56_61 = arith.constant 56 : index
    %c0_62 = arith.constant 0 : index
    %107 = vector.load %arg8[%c56_61, %c0_62] : memref<72x256xbf16, #tpu.memory_space<vmem>>, vector<8x256xbf16>
    tpu.vector_store %arg8[%c56_61, %c0_62], %106 {strides = array<i32>} : memref<72x256xbf16, #tpu.memory_space<vmem>>, vector<8x256xbf16>,
    %c255_i32_63 = arith.constant 255 : i32
    %108 = tpu.dynamic_rotate %80 by %c255_i32_63 dim 1 : vector<8x256xf32>, i32 -> vector<8x256xf32>
    %cst_64 = arith.constant 0.000000e+00 : f32
    %109 = vector.broadcast %cst_64 : f32 to vector<8x256xf32>
    %110 = arith.select %22, %108, %109 : vector<8x256xi1>, vector<8x256xf32>
    %c16_i32_65 = arith.constant 16 : i32
    %111 = tpu.dynamic_rotate %110 by %c16_i32_65 dim 1 : vector<8x256xf32>, i32 -> vector<8x256xf32>
    %cst_66 = arith.constant 0.000000e+00 : f32
    %112 = vector.broadcast %cst_66 : f32 to vector<8x256xf32>
    %113 = arith.select %24, %111, %112 : vector<8x256xi1>, vector<8x256xf32>
    %114 = arith.truncf %113 : vector<8x256xf32> to vector<8x256xbf16>
    %c16_67 = arith.constant 16 : index
    %c0_68 = arith.constant 0 : index
    %115 = vector.load %arg8[%c16_67, %c0_68] : memref<72x256xbf16, #tpu.memory_space<vmem>>, vector<8x256xbf16>
    tpu.vector_store %arg8[%c16_67, %c0_68], %114 {strides = array<i32>} : memref<72x256xbf16, #tpu.memory_space<vmem>>, vector<8x256xbf16>,
    %116 = arith.truncf %110 : vector<8x256xf32> to vector<8x256xbf16>
    %c40_69 = arith.constant 40 : index
    %c0_70 = arith.constant 0 : index
    %117 = vector.load %arg8[%c40_69, %c0_70] : memref<72x256xbf16, #tpu.memory_space<vmem>>, vector<8x256xbf16>
    tpu.vector_store %arg8[%c40_69, %c0_70], %116 {strides = array<i32>} : memref<72x256xbf16, #tpu.memory_space<vmem>>, vector<8x256xbf16>,
    %c240_i32_71 = arith.constant 240 : i32
    %118 = tpu.dynamic_rotate %110 by %c240_i32_71 dim 1 : vector<8x256xf32>, i32 -> vector<8x256xf32>
    %cst_72 = arith.constant 0.000000e+00 : f32
    %119 = vector.broadcast %cst_72 : f32 to vector<8x256xf32>
    %120 = arith.select %26, %118, %119 : vector<8x256xi1>, vector<8x256xf32>
    %121 = arith.truncf %120 : vector<8x256xf32> to vector<8x256xbf16>
    %c64_73 = arith.constant 64 : index
    %c0_74 = arith.constant 0 : index
    %122 = vector.load %arg8[%c64_73, %c0_74] : memref<72x256xbf16, #tpu.memory_space<vmem>>, vector<8x256xbf16>
    tpu.vector_store %arg8[%c64_73, %c0_74], %121 {strides = array<i32>} : memref<72x256xbf16, #tpu.memory_space<vmem>>, vector<8x256xbf16>,
    %c0_75 = arith.constant 0 : index
    %c0_76 = arith.constant 0 : index
    %123 = vector.load %arg5[%c0_75, %c0_76] : memref<8x72xbf16, #tpu.memory_space<vmem>>, vector<8x72xbf16>
    %c0_77 = arith.constant 0 : index
    %c0_78 = arith.constant 0 : index
    %124 = vector.load %arg8[%c0_77, %c0_78] : memref<72x256xbf16, #tpu.memory_space<vmem>>, vector<72x256xbf16>
    %cst_79 = arith.constant dense<0.000000e+00> : vector<8x256xf32>
    %125 = tpu.matmul %123, %124, %cst_79 {dimension_numbers = #tpu.dot_dimension_numbers<[1], [0], [0], [1], [0, 0, 1, 1], [], []>} : vector<8x72xbf16>, vector<72x256xbf16>, vector<8x256xf32> -> vector<8x256xf32>
    %c0_80 = arith.constant 0 : index
    %c0_81 = arith.constant 0 : index
    %126 = vector.load %arg6[%c0_80, %c0_81] : memref<8x1xf32, #tpu.memory_space<vmem>>, vector<8x1xf32>
    %127 = vector.broadcast %126 : vector<8x1xf32> to vector<8x256xf32>
    %128 = arith.addf %125, %127 : vector<8x256xf32>
    %129 = arith.addf %128, %1 : vector<8x256xf32>
    %c0_82 = arith.constant 0 : index
    %c0_83 = arith.constant 0 : index
    %c0_84 = arith.constant 0 : index
    %130 = vector.load %arg7[%c0_82, %c0_83, %c0_84] : memref<1x8x256xf32, #tpu.memory_space<vmem>>, vector<1x8x256xf32>
    %131 = vector.shape_cast %130 : vector<1x8x256xf32> to vector<8x256xf32>
    %132 = vector.shape_cast %129 : vector<8x256xf32> to vector<1x8x256xf32>
    tpu.vector_store %arg7[%c0_82, %c0_83, %c0_84], %132 {strides = array<i32>} : memref<1x8x256xf32, #tpu.memory_space<vmem>>, vector<1x8x256xf32>,
    return
  }
  func.func @transform_0(%arg0: i32) -> (i32, i32, i32) {
    %c0_i32 = arith.constant 0 : i32
    %c0_i32_0 = arith.constant 0 : i32
    %c0_i32_1 = arith.constant 0 : i32
    return %arg0, %c0_i32, %c0_i32_0 : i32, i32, i32
  }
  func.func @transform_1(%arg0: i32) -> (i32, i32) {
    %c0_i32 = arith.constant 0 : i32
    %c0_i32_0 = arith.constant 0 : i32
    %c0_i32_1 = arith.constant 0 : i32
    return %c0_i32, %c0_i32_0 : i32, i32
  }
  func.func @transform_2(%arg0: i32) -> (i32, i32) {
    %c0_i32 = arith.constant 0 : i32
    %c0_i32_0 = arith.constant 0 : i32
    %c0_i32_1 = arith.constant 0 : i32
    return %c0_i32, %c0_i32_0 : i32, i32
  }
  func.func @transform_3(%arg0: i32) -> (i32, i32) {
    %c0_i32 = arith.constant 0 : i32
    %c0_i32_0 = arith.constant 0 : i32
    %c0_i32_1 = arith.constant 0 : i32
    return %c0_i32, %c0_i32_0 : i32, i32
  }
  func.func @transform_4(%arg0: i32) -> (i32, i32) {
    %c0_i32 = arith.constant 0 : i32
    %c0_i32_0 = arith.constant 0 : i32
    %c0_i32_1 = arith.constant 0 : i32
    return %c0_i32, %c0_i32_0 : i32, i32
  }
  func.func @transform_5(%arg0: i32) -> (i32, i32) {
    %c0_i32 = arith.constant 0 : i32
    %c0_i32_0 = arith.constant 0 : i32
    %c0_i32_1 = arith.constant 0 : i32
    return %c0_i32, %c0_i32_0 : i32, i32
  }
  func.func @transform_6(%arg0: i32) -> (i32, i32, i32) {
    %c0_i32 = arith.constant 0 : i32
    %c0_i32_0 = arith.constant 0 : i32
    %c0_i32_1 = arith.constant 0 : i32
    return %arg0, %c0_i32, %c0_i32_0 : i32, i32, i32
  }
}

</mosaic_0001>

<llo_original>
// kernel: residual_block.1
$region0: #{residual_block.1}
  #allocation0 [shape = 'u32[]', space=smem, size = 0x4, offset = 0x4, fixed_abs, tag = 'smem constant byte address 0x4 - core index']
  #allocation1 [shape = 'u32[144,128]{1,0:T(1,128)}', space=vmem, size = 0x12000, scoped, tag = 'internal scratch']
  #allocation2 [shape = 'bf16[72,256]{1,0:T(8,128)(2,1)}', space=vmem, size = 0x9000, scoped, tag = 'scratch operand']
  %s0 = inlined_call_operand.vmem [shape: f32[2,8,256], index: 0, kind: input, shape index: {}]
  %s1 = inlined_call_operand.vmem [shape: bf16[8,72], index: 1, kind: input, shape index: {}]
  %s2 = inlined_call_operand.vmem [shape: f32[8,1], index: 2, kind: input, shape index: {}]
  %s3 = inlined_call_operand.vmem [shape: f32[8,1], index: 3, kind: input, shape index: {}]
  %s4 = inlined_call_operand.vmem [shape: bf16[8,72], index: 4, kind: input, shape index: {}]
  %s5 = inlined_call_operand.vmem [shape: f32[8,1], index: 5, kind: input, shape index: {}]
  %s6 = inlined_call_operand.vmem [shape: f32[2,8,256], index: 6, kind: output, shape index: {}]
  %s7 = sld [smem:[#allocation0]]
  $region57: #{residual_block.1} parent=0
    _
  %s9 = ssub.s32 1, %s7
  %s10 = scalar_select 0, %s9, %s7
  loop: start=0, step=1, limit=4
  $region2: #{residual_block.1} parent=0 // loop_pre_header
    _
  $region3: #{residual_block.1} parent=0 // loop_header
    %s12 = sphi 0, %s16
    %p13 = scmp.ge.s32.totalorder %s12, 4
    %s22 = sphi 0, %s24
    %s25 = sphi 0, %s22
    %s26 = sphi 0, %s25
    %s42 = sphi 0, %s26
    %s46 = sphi 0, %s46
    %s48 = sphi 0, %s46
    %s49 = sphi 0, %s48
    %s63 = sphi 0, %s49
    %s67 = sphi 0, %s67
    %s69 = sphi 0, %s67
    %s70 = sphi 0, %s69
    %s84 = sphi 0, %s70
    %s88 = sphi 0, %s88
    %s90 = sphi 0, %s88
    %s91 = sphi 0, %s90
    %s105 = sphi 0, %s91
    %s109 = sphi 0, %s109
    %s111 = sphi 0, %s109
    %s112 = sphi 0, %s111
    %s126 = sphi 0, %s112
    %s130 = sphi 0, %s130
    %s132 = sphi 0, %s130
    %s133 = sphi 0, %s132
    %s147 = sphi 0, %s133
    %s153 = sphi 0, %s155
    %s156 = sphi 0, %s153
    %s157 = sphi 0, %s156
    %s173 = sphi 0, %s157
  $region4: #{residual_block.1} parent=0 // loop_header_branch
    %15 = sbr.rel (%p13) target = $region8
  $region5: #{residual_block.1} parent=0 // loop_body
    %s17 = ssub.s32 %s12, 1
    %s18 = ssub.s32 %s12, 2
    %s19 = sadd.s32 %s12, 1
    %s20 = ssub.s32 %s12, %s19
    %p21 = scmp.eq.s32.totalorder %s20, 0
    %s23 = sadd.s32 %s22, 1
    %s24 = scalar_select %p21, %s22, %s23
    %p27 = pneg %p21
    %p28 = scmp.eq.s32.totalorder %s12, 1
    %p29 = por %p27, %p28
    %p30 = scmp.ne.s32.totalorder %s22, %s25
    %p31 = scmp.eq.s32.totalorder %s12, 0
    %p32 = por %p30, %p31
    %p33 = scmp.ne.s32.totalorder %s22, %s25
    %p34 = scmp.eq.s32.totalorder %s17, 1
    %p35 = por %p33, %p34
    %p36 = scmp.ne.s32.totalorder %s25, %s26
    %p37 = scmp.eq.s32.totalorder %s17, 0
    %p38 = por %p36, %p37
    %p39 = scmp.ne.s32.totalorder %s25, %s26
    %p40 = scmp.eq.s32.totalorder %s18, 1
    %p41 = por %p39, %p40
    %p43 = scmp.ne.s32.totalorder %s26, %s42
    %p44 = scmp.eq.s32.totalorder %s18, 0
    %p45 = por %p43, %p44
    %s47 = sadd.s32 %s46, 1
    %p50 = scmp.eq.s32.totalorder %s12, 1
    %p51 = scmp.ne.s32.totalorder %s46, %s48
    %p52 = scmp.eq.s32.totalorder %s12, 0
    %p53 = por %p51, %p52
    %p54 = scmp.ne.s32.totalorder %s46, %s48
    %p55 = scmp.eq.s32.totalorder %s17, 1
    %p56 = por %p54, %p55
    %p57 = scmp.ne.s32.totalorder %s48, %s49
    %p58 = scmp.eq.s32.totalorder %s17, 0
    %p59 = por %p57, %p58
    %p60 = scmp.ne.s32.totalorder %s48, %s49
    %p61 = scmp.eq.s32.totalorder %s18, 1
    %p62 = por %p60, %p61
    %p64 = scmp.ne.s32.totalorder %s49, %s63
    %p65 = scmp.eq.s32.totalorder %s18, 0
    %p66 = por %p64, %p65
    %s68 = sadd.s32 %s67, 1
    %p71 = scmp.eq.s32.totalorder %s12, 1
    %p72 = scmp.ne.s32.totalorder %s67, %s69
    %p73 = scmp.eq.s32.totalorder %s12, 0
    %p74 = por %p72, %p73
    %p75 = scmp.ne.s32.totalorder %s67, %s69
    %p76 = scmp.eq.s32.totalorder %s17, 1
    %p77 = por %p75, %p76
    %p78 = scmp.ne.s32.totalorder %s69, %s70
    %p79 = scmp.eq.s32.totalorder %s17, 0
    %p80 = por %p78, %p79
    %p81 = scmp.ne.s32.totalorder %s69, %s70
    %p82 = scmp.eq.s32.totalorder %s18, 1
    %p83 = por %p81, %p82
    %p85 = scmp.ne.s32.totalorder %s70, %s84
    %p86 = scmp.eq.s32.totalorder %s18, 0
    %p87 = por %p85, %p86
    %s89 = sadd.s32 %s88, 1
    %p92 = scmp.eq.s32.totalorder %s12, 1
    %p93 = scmp.ne.s32.totalorder %s88, %s90
    %p94 = scmp.eq.s32.totalorder %s12, 0
    %p95 = por %p93, %p94
    %p96 = scmp.ne.s32.totalorder %s88, %s90
    %p97 = scmp.eq.s32.totalorder %s17, 1
    %p98 = por %p96, %p97
    %p99 = scmp.ne.s32.totalorder %s90, %s91
    %p100 = scmp.eq.s32.totalorder %s17, 0
    %p101 = por %p99, %p100
    %p102 = scmp.ne.s32.totalorder %s90, %s91
    %p103 = scmp.eq.s32.totalorder %s18, 1
    %p104 = por %p102, %p103
    %p106 = scmp.ne.s32.totalorder %s91, %s105
    %p107 = scmp.eq.s32.totalorder %s18, 0
    %p108 = por %p106, %p107
    %s110 = sadd.s32 %s109, 1
    %p113 = scmp.eq.s32.totalorder %s12, 1
    %p114 = scmp.ne.s32.totalorder %s109, %s111
    %p115 = scmp.eq.s32.totalorder %s12, 0
    %p116 = por %p114, %p115
    %p117 = scmp.ne.s32.totalorder %s109, %s111
    %p118 = scmp.eq.s32.totalorder %s17, 1
    %p119 = por %p117, %p118
    %p120 = scmp.ne.s32.totalorder %s111, %s112
    %p121 = scmp.eq.s32.totalorder %s17, 0
    %p122 = por %p120, %p121
    %p123 = scmp.ne.s32.totalorder %s111, %s112
    %p124 = scmp.eq.s32.totalorder %s18, 1
    %p125 = por %p123, %p124
    %p127 = scmp.ne.s32.totalorder %s112, %s126
    %p128 = scmp.eq.s32.totalorder %s18, 0
    %p129 = por %p127, %p128
    %s131 = sadd.s32 %s130, 1
    %p134 = scmp.eq.s32.totalorder %s12, 1
    %p135 = scmp.ne.s32.totalorder %s130, %s132
    %p136 = scmp.eq.s32.totalorder %s12, 0
    %p137 = por %p135, %p136
    %p138 = scmp.ne.s32.totalorder %s130, %s132
    %p139 = scmp.eq.s32.totalorder %s17, 1
    %p140 = por %p138, %p139
    %p141 = scmp.ne.s32.totalorder %s132, %s133
    %p142 = scmp.eq.s32.totalorder %s17, 0
    %p143 = por %p141, %p142
    %p144 = scmp.ne.s32.totalorder %s132, %s133
    %p145 = scmp.eq.s32.totalorder %s18, 1
    %p146 = por %p144, %p145
    %p148 = scmp.ne.s32.totalorder %s133, %s147
    %p149 = scmp.eq.s32.totalorder %s18, 0
    %p150 = por %p148, %p149
    %s151 = ssub.s32 %s12, %s19
    %p152 = scmp.eq.s32.totalorder %s151, 0
    %s154 = sadd.s32 %s153, 1
    %s155 = scalar_select %p152, %s153, %s154
    %p158 = pneg %p152
    %p159 = scmp.eq.s32.totalorder %s12, 1
    %p160 = por %p158, %p159
    %p161 = scmp.ne.s32.totalorder %s153, %s156
    %p162 = scmp.eq.s32.totalorder %s12, 0
    %p163 = por %p161, %p162
    %p164 = scmp.ne.s32.totalorder %s153, %s156
    %p165 = scmp.eq.s32.totalorder %s17, 1
    %p166 = por %p164, %p165
    %p167 = scmp.ne.s32.totalorder %s156, %s157
    %p168 = scmp.eq.s32.totalorder %s17, 0
    %p169 = por %p167, %p168
    %p170 = scmp.ne.s32.totalorder %s156, %s157
    %p171 = scmp.eq.s32.totalorder %s18, 1
    %p172 = por %p170, %p171
    %p174 = scmp.ne.s32.totalorder %s157, %s173
    %p175 = scmp.eq.s32.totalorder %s18, 0
    %p176 = por %p174, %p175
    %p177 = scmp.le.s32.totalorder 1, %s12
    %p178 = scmp.lt.s32.totalorder %s12, 3
    %p179 = pnand %p177, %p178
    %p180 = pneg %p179
    // Predicated region
    $region9: #{residual_block.1} parent=5 // pred_check
      _
    $region10: #{residual_block.1} parent=5 // pred_check_branch
      %182 = sbr.rel (%p179) target = $region12
    $region11: #{residual_block.1} parent=5 // pred_region
      %s183 = ssub.s32 %s12, 1
      // Predicated region
      $region13: #{residual_block.1} parent=11 // pred_check
        %p184 = pneg %p59
      $region14: #{residual_block.1} parent=11 // pred_check_branch
        %186 = sbr.rel (%p184) target = $region16
      $region15: #{residual_block.1} parent=11 // pred_region
        _
      $region16: #{residual_block.1} parent=11 // pred_fallthru
        _
      // Predicated region
      $region17: #{residual_block.1} parent=11 // pred_check
        %p187 = pneg %p80
      $region18: #{residual_block.1} parent=11 // pred_check_branch
        %189 = sbr.rel (%p187) target = $region20
      $region19: #{residual_block.1} parent=11 // pred_region
        _
      $region20: #{residual_block.1} parent=11 // pred_fallthru
        _
      // Predicated region
      $region21: #{residual_block.1} parent=11 // pred_check
        %p190 = pneg %p101
      $region22: #{residual_block.1} parent=11 // pred_check_branch
        %192 = sbr.rel (%p190) target = $region24
      $region23: #{residual_block.1} parent=11 // pred_region
        _
      $region24: #{residual_block.1} parent=11 // pred_fallthru
        _
      // Predicated region
      $region25: #{residual_block.1} parent=11 // pred_check
        %p193 = pneg %p122
      $region26: #{residual_block.1} parent=11 // pred_check_branch
        %195 = sbr.rel (%p193) target = $region28
      $region27: #{residual_block.1} parent=11 // pred_region
        _
      $region28: #{residual_block.1} parent=11 // pred_fallthru
        _
      // Predicated region
      $region29: #{residual_block.1} parent=11 // pred_check
        %p196 = pneg %p143
      $region30: #{residual_block.1} parent=11 // pred_check_branch
        %198 = sbr.rel (%p196) target = $region32
      $region31: #{residual_block.1} parent=11 // pred_region
        _
      $region32: #{residual_block.1} parent=11 // pred_fallthru
        _
    $region12: #{residual_block.1} parent=5 // pred_fallthru
      _
    %p199 = scmp.lt.s32.totalorder %s12, 2
    // Predicated region
    $region33: #{residual_block.1} parent=5 // pred_check
      %p200 = pneg %p199
    $region34: #{residual_block.1} parent=5 // pred_check_branch
      %202 = sbr.rel (%p200) target = $region36
    $region35: #{residual_block.1} parent=5 // pred_region
      // Predicated region
      $region37: #{residual_block.1} parent=35 // pred_check
        %p203 = pneg %p32
      $region38: #{residual_block.1} parent=35 // pred_check_branch
        %205 = sbr.rel (%p203) target = $region40
      $region39: #{residual_block.1} parent=35 // pred_region
        %p206 = scmp.lt.s32.totalorder %s12, 1
        %s207 = scalar_select %p206, %s12, 1
        %s208 = smul.addr %s207, 2
        %s209 = smul.addr %s208, 8
        %s210 = scalar_lea.vmem %s0, %s209
      $region40: #{residual_block.1} parent=35 // pred_fallthru
        _
    $region36: #{residual_block.1} parent=5 // pred_fallthru
      _
    %p211 = scmp.le.s32.totalorder 1, %s12
    %p212 = scmp.lt.s32.totalorder %s12, 3
    %p213 = pnand %p211, %p212
    %p214 = pneg %p213
    // Predicated region
    $region41: #{residual_block.1} parent=5 // pred_check
      _
    $region42: #{residual_block.1} parent=5 // pred_check_branch
      %216 = sbr.rel (%p213) target = $region44
    $region43: #{residual_block.1} parent=5 // pred_region
      %s217 = ssub.s32 %s12, 1
      %p218 = scmp.lt.s32.totalorder %s17, 1
      %s219 = scalar_select %p218, %s17, 1
      %s220 = smul.addr %s219, 2
      %s221 = smul.addr %s220, 8
      %s222 = scalar_lea.vmem %s0, %s221
      %p223 = pneg %p38
      %p224 = pneg %p35
      %p225 = pneg %p59
      %p226 = pneg %p56
      %p227 = pneg %p80
      %p228 = pneg %p77
      %p229 = pneg %p101
      %p230 = pneg %p98
      %p231 = pneg %p122
      %p232 = pneg %p119
      %p233 = pneg %p143
      %p234 = pneg %p140
      %p235 = pneg %p169
      %p236 = pneg %p166
      %p237 = scmp.lt.s32.totalorder %s17, 1
      %s238 = scalar_select %p237, %s17, 1
      %s239 = smul.addr %s238, 2
      %s240 = smul.addr %s239, 8
      %s241 = scalar_lea.vmem %s6, %s240
      %p242 = scmp.lt.s32.totalorder %s17, 1
      %s243 = scalar_select %p242, %s17, 1
      %s244 = smul.addr %s243, 2
      %s245 = smul.addr %s244, 8
      %s246 = scalar_lea.vmem %s0, %s245
      %p247 = scmp.lt.s32.totalorder %s17, 1
      %s248 = scalar_select %p247, %s17, 1
      %s249 = smul.addr %s248, 2
      %s250 = smul.addr %s249, 8
      %s251 = scalar_lea.vmem %s6, %s250
      %v253 = vld [vmem:[%s246] sm:$0xff]
      %v254 = vld [vmem:[%s246 + $0x8] sm:$0xff]
      %v255 = vlaneseq
      %v256 = vand.u32 %v255, 127
      %v257 = vadd.s32 %v256, 128
      %vm258 = vcmp.lt.s32.totalorder %v256, 0
      %v259 = vsub.s32 0, %v256
      %v260 = vsel %vm258, %v259, %v256
      %v261 = vshrl.u32 %v260, 4
      %v262 = vand.u32 %v260, 15
      %v263 = vsub.s32 0, %v262
      %v264 = vsel %vm258, %v263, %v262
      %vm265 = vcmp.lt.s32.totalorder %v257, 0
      %v266 = vsub.s32 0, %v257
      %v267 = vsel %vm265, %v266, %v257
      %v268 = vshrl.u32 %v267, 4
      %v269 = vand.u32 %v267, 15
      %v270 = vsub.s32 0, %v269
      %v271 = vsel %vm265, %v270, %v269
      %vm272 = vcmp.ne.s32.totalorder %v264, 0
      %vm273 = vcmp.ne.s32.totalorder %v271, 0
      %vm274 = vcmp.lt.s32.totalorder %v264, 0
      %vm275 = vcmp.lt.s32.totalorder %v271, 0
      %vm276 = vmand %vm274, %vm272
      %vm277 = vmand %vm275, %vm273
      %v278 = vadd.s32 %v264, 16
      %v279 = vadd.s32 %v271, 16
      %v280 = vsel %vm276, %v278, %v264
      %v281 = vsel %vm277, %v279, %v271
      %vm282 = vcmp.ne.s32.totalorder %v280, 0
      %vm283 = vcmp.ne.s32.totalorder %v281, 0
      %vm284 = vcmp.ne.s32.totalorder %v280, 15
      %vm285 = vcmp.ne.s32.totalorder %v281, 15
      %vm286 = vcmp.ge.s32.totalorder %v256, 16
      %vm287 = vcmp.ge.s32.totalorder %v257, 16
      %vm288 = vcmp.lt.s32.totalorder %v256, 240
      %vm289 = vcmp.lt.s32.totalorder %v257, 240
      %290 = vrot.lane.b32.xlu0 %v253, 1
      %v291 = vpop.permute.xlu0 %290
      %292 = vrot.lane.b32.xlu0 %v254, 1
      %v293 = vpop.permute.xlu0 %292
      %vm294 = vcmp.lt.s32.totalorder %v256, 1
      %v295 = vsel %vm294, %v291, %v293
      %v296 = vsel %vm294, %v293, %v291
      %v297 = vsel %vm282, %v296, 0.0
      %v298 = vsel %vm283, %v295, 0.0
      %299 = vrot.lane.b32.xlu0 %v297, 16
      %v300 = vpop.permute.xlu0 %299
      %301 = vrot.lane.b32.xlu0 %v298, 16
      %v302 = vpop.permute.xlu0 %301
      %vm303 = vcmp.lt.s32.totalorder %v256, 16
      %v304 = vsel %vm303, %v300, %v302
      %v305 = vsel %vm303, %v302, %v300
      %v306 = vsel %vm286, %v305, 0.0
      %v307 = vsel %vm287, %v304, 0.0
      %v308 = vpack.c.bf16 %v306, %v306
      %v309 = vpack.c.bf16 %v307, %v307
      %v312 = vunpack.c.l.b16 %v308
      %v313 = vunpack.c.l.b16 %v309
      %v314 = vpack.c.b16 %v313, %v312
      %316 = vst [vmem:[#allocation2] sm:$0xff] %v314
      %v317 = vpack.c.bf16 %v297, %v297
      %v318 = vpack.c.bf16 %v298, %v298
      %v321 = vunpack.c.l.b16 %v317
      %v322 = vunpack.c.l.b16 %v318
      %v323 = vpack.c.b16 %v322, %v321
      %325 = vst [vmem:[#allocation2 + $0x18] sm:$0xff] %v323
      %326 = vrot.lane.b32.xlu0 %v297, 112
      %v327 = vpop.permute.xlu0 %326
      %328 = vrot.lane.b32.xlu0 %v298, 112
      %v329 = vpop.permute.xlu0 %328
      %vm330 = vcmp.lt.s32.totalorder %v256, 112
      %v331 = vsel %vm330, %v327, %v329
      %v332 = vsel %vm330, %v329, %v327
      %v333 = vsel %vm288, %v331, 0.0
      %v334 = vsel %vm289, %v332, 0.0
      %v335 = vpack.c.bf16 %v333, %v333
      %v336 = vpack.c.bf16 %v334, %v334
      %v339 = vunpack.c.l.b16 %v335
      %v340 = vunpack.c.l.b16 %v336
      %v341 = vpack.c.b16 %v340, %v339
      %343 = vst [vmem:[#allocation2 + $0x30] sm:$0xff] %v341
      %344 = vrot.lane.b32.xlu0 %v253, 16
      %v345 = vpop.permute.xlu0 %344
      %346 = vrot.lane.b32.xlu0 %v254, 16
      %v347 = vpop.permute.xlu0 %346
      %v348 = vsel %vm303, %v345, %v347
      %v349 = vsel %vm303, %v347, %v345
      %v350 = vsel %vm286, %v349, 0.0
      %v351 = vsel %vm287, %v348, 0.0
      %v352 = vpack.c.bf16 %v350, %v350
      %v353 = vpack.c.bf16 %v351, %v351
      %v356 = vunpack.c.l.b16 %v352
      %v357 = vunpack.c.l.b16 %v353
      %v358 = vpack.c.b16 %v357, %v356
      %360 = vst [vmem:[#allocation2 + $0x8] sm:$0xff] %v358
      %v361 = vpack.c.bf16 %v253, %v253
      %v362 = vpack.c.bf16 %v254, %v254
      %v365 = vunpack.c.l.b16 %v361
      %v366 = vunpack.c.l.b16 %v362
      %v367 = vpack.c.b16 %v366, %v365
      %369 = vst [vmem:[#allocation2 + $0x20] sm:$0xff] %v367
      %370 = vrot.lane.b32.xlu0 %v253, 112
      %v371 = vpop.permute.xlu0 %370
      %372 = vrot.lane.b32.xlu0 %v254, 112
      %v373 = vpop.permute.xlu0 %372
      %v374 = vsel %vm330, %v371, %v373
      %v375 = vsel %vm330, %v373, %v371
      %v376 = vsel %vm288, %v374, 0.0
      %v377 = vsel %vm289, %v375, 0.0
      %v378 = vpack.c.bf16 %v376, %v376
      %v379 = vpack.c.bf16 %v377, %v377
      %v382 = vunpack.c.l.b16 %v378
      %v383 = vunpack.c.l.b16 %v379
      %v384 = vpack.c.b16 %v383, %v382
      %386 = vst [vmem:[#allocation2 + $0x38] sm:$0xff] %v384
      %387 = vrot.lane.b32.xlu0 %v253, 127
      %v388 = vpop.permute.xlu0 %387
      %389 = vrot.lane.b32.xlu0 %v254, 127
      %v390 = vpop.permute.xlu0 %389
      %vm391 = vcmp.lt.s32.totalorder %v256, 127
      %v392 = vsel %vm391, %v388, %v390
      %v393 = vsel %vm391, %v390, %v388
      %v394 = vsel %vm284, %v392, 0.0
      %v395 = vsel %vm285, %v393, 0.0
      %396 = vrot.lane.b32.xlu0 %v394, 16
      %v397 = vpop.permute.xlu0 %396
      %398 = vrot.lane.b32.xlu0 %v395, 16
      %v399 = vpop.permute.xlu0 %398
      %v400 = vsel %vm303, %v397, %v399
      %v401 = vsel %vm303, %v399, %v397
      %v402 = vsel %vm286, %v401, 0.0
      %v403 = vsel %vm287, %v400, 0.0
      %v404 = vpack.c.bf16 %v402, %v402
      %v405 = vpack.c.bf16 %v403, %v403
      %v408 = vunpack.c.l.b16 %v404
      %v409 = vunpack.c.l.b16 %v405
      %v410 = vpack.c.b16 %v409, %v408
      %412 = vst [vmem:[#allocation2 + $0x10] sm:$0xff] %v410
      %v413 = vpack.c.bf16 %v394, %v394
      %v414 = vpack.c.bf16 %v395, %v395
      %v417 = vunpack.c.l.b16 %v413
      %v418 = vunpack.c.l.b16 %v414
      %v419 = vpack.c.b16 %v418, %v417
      %421 = vst [vmem:[#allocation2 + $0x28] sm:$0xff] %v419
      %422 = vrot.lane.b32.xlu0 %v394, 112
      %v423 = vpop.permute.xlu0 %422
      %424 = vrot.lane.b32.xlu0 %v395, 112
      %v425 = vpop.permute.xlu0 %424
      %v426 = vsel %vm330, %v423, %v425
      %v427 = vsel %vm330, %v425, %v423
      %v428 = vsel %vm288, %v426, 0.0
      %v429 = vsel %vm289, %v427, 0.0
      %v430 = vpack.c.bf16 %v428, %v428
      %v431 = vpack.c.bf16 %v429, %v429
      %v434 = vunpack.c.l.b16 %v430
      %v435 = vunpack.c.l.b16 %v431
      %v436 = vpack.c.b16 %v435, %v434
      %438 = vst [vmem:[#allocation2 + $0x40] sm:$0xff] %v436
      %v439 = vld [vmem:[%s1] sm:$0xf]
      %v440 = vld [vmem:[#allocation2] sm:$0xff]
      %v441 = vld [vmem:[#allocation2 + $0x8] sm:$0xff]
      %v442 = vld [vmem:[#allocation2 + $0x10] sm:$0xff]
      %v443 = vld [vmem:[#allocation2 + $0x18] sm:$0xff]
      %v444 = vld [vmem:[#allocation2 + $0x20] sm:$0xff]
      %v445 = vld [vmem:[#allocation2 + $0x28] sm:$0xff]
      %v446 = vld [vmem:[#allocation2 + $0x30] sm:$0xff]
      %v447 = vld [vmem:[#allocation2 + $0x38] sm:$0xff]
      %v448 = vld [vmem:[#allocation2 + $0x40] sm:$0xff]
      %v449 = vld [vmem:[%s2] sm:$0xff]
      %451 = vset.pattern.permute.xlu0 0
      %452 = vperm.xlu0 %451, %v449
      %v453 = vpop.permute.xlu0 %452
      %v464 = vunpack.c.l.b16 %v440
      %v465 = vunpack.c.h.b16 %v440
      %v466 = vunpack.c.l.b16 %v441
      %v467 = vunpack.c.h.b16 %v441
      %v468 = vunpack.c.l.b16 %v442
      %v469 = vunpack.c.h.b16 %v442
      %v470 = vunpack.c.l.b16 %v443
      %v471 = vunpack.c.h.b16 %v443
      %v472 = vunpack.c.l.b16 %v444
      %v473 = vunpack.c.h.b16 %v444
      %v474 = vunpack.c.l.b16 %v445
      %v475 = vunpack.c.h.b16 %v445
      %v476 = vunpack.c.l.b16 %v446
      %v477 = vunpack.c.h.b16 %v446
      %v478 = vunpack.c.l.b16 %v447
      %v479 = vunpack.c.h.b16 %v447
      %v480 = vunpack.c.l.b16 %v448
      %v481 = vunpack.c.h.b16 %v448
      %v482 = vpack.c.b16 %v466, %v464
      %v483 = vpack.c.b16 %v467, %v465
      %v484 = vpack.c.b16 %v470, %v468
      %v485 = vpack.c.b16 %v471, %v469
      %v486 = vpack.c.b16 %v474, %v472
      %v487 = vpack.c.b16 %v475, %v473
      %v488 = vpack.c.b16 %v478, %v476
      %v489 = vpack.c.b16 %v479, %v477
      %v490 = vpack.c.b16 %v480, %v480
      %v491 = vpack.c.b16 %v481, %v481
      %vm500 = vcmask 588800
      %v502 = vsel %vm500, %v439, 0
      %vm504 = vcmask 1043456
      %v506 = vsel %vm504, %v490, 0
      %v509 = vsel %vm504, %v491, 0
      %511 = vmatprep.subr.bf16.mxu0 %v483
      %512 = vmatpush1.bf16.msra.mxu0 %v482
      %513 = vmatprep.subr.bf16.mxu0 %v485
      %514 = vmatpush1.bf16.msra.mxu0 %v484
      %515 = vmatprep.subr.bf16.mxu0 %v487
      %516 = vmatpush1.bf16.msra.mxu0 %v486
      %517 = vmatprep.subr.bf16.mxu0 %v489
      %518 = vmatpush1.bf16.msra.mxu0 %v488
      %519 = vmatprep.subr.bf16.mxu0 %v509
      %520 = vmatpush1.bf16.msra.mxu0 %v506
      %521 = vmatprep.subr.bf16.mxu0 0
      %522 = vmatpush1.bf16.msra.mxu0 0
      %523 = vmatprep.subr.bf16.mxu0 0
      %524 = vmatpush1.bf16.msra.mxu0 0
      %525 = vmatprep.subr.bf16.mxu0 0
      %526 = vmatpush1.bf16.msra.mxu0 0
      %527 = vmatprep.subr.bf16.mxu0 0
      %528 = vmatpush1.bf16.msra.mxu0 0
      %529 = vmatprep.subr.bf16.mxu0 0
      %530 = vmatpush1.bf16.msra.mxu0 0
      %531 = vmatprep.subr.bf16.mxu0 0
      %532 = vmatpush1.bf16.msra.mxu0 0
      %533 = vmatprep.subr.bf16.mxu0 0
      %534 = vmatpush1.bf16.msra.mxu0 0
      %535 = vmatprep.subr.bf16.mxu0 0
      %536 = vmatpush1.bf16.msra.mxu0 0
      %537 = vmatprep.subr.bf16.mxu0 0
      %538 = vmatpush1.bf16.msra.mxu0 0
      %539 = vmatprep.subr.bf16.mxu0 0
      %540 = vmatpush1.bf16.msra.mxu0 0
      %541 = vmatprep.subr.bf16.mxu0 0
      %542 = vmatpush1.bf16.msra.mxu0 0
      %543 = vmatprep.mubr.bf16.mxu0 0
      %544 = vmatmul.mubr.bf16.gmra.mrb[0].mxu0 %v502
      %v545 = vpop.f32.mrb[0].mxu0
      %v546 = vadd.f32 %v453, %v545
      %v547 = vpop.f32.mrb[0].mxu0
      %v548 = vadd.f32 %v453, %v547
      %v549 = vpop.f32.mrb[0].mxu0
      %v550 = vpop.f32.mrb[0].mxu0
      %551 = vdwg.mxu0
      %vm552 = vcmp.gt.f32.partialorder %v546, 0.0
      %vm553 = vcmp.gt.f32.partialorder %v548, 0.0
      %v554 = vld [vmem:[%s3] sm:$0xff]
      %556 = vset.pattern.permute.xlu0 0
      %557 = vperm.xlu0 %556, %v554
      %v558 = vpop.permute.xlu0 %557
      %v560 = vmul.f32 %v546, %v558
      %v561 = vmul.f32 %v548, %v558
      %v562 = vsel %vm552, %v546, %v560
      %v563 = vsel %vm553, %v548, %v561
      %564 = vrot.lane.b32.xlu0 %v562, 1
      %v565 = vpop.permute.xlu0 %564
      %566 = vrot.lane.b32.xlu0 %v563, 1
      %v567 = vpop.permute.xlu0 %566
      %v568 = vsel %vm294, %v565, %v567
      %v569 = vsel %vm294, %v567, %v565
      %v570 = vsel %vm282, %v569, 0.0
      %v571 = vsel %vm283, %v568, 0.0
      %572 = vrot.lane.b32.xlu0 %v570, 16
      %v573 = vpop.permute.xlu0 %572
      %574 = vrot.lane.b32.xlu0 %v571, 16
      %v575 = vpop.permute.xlu0 %574
      %v576 = vsel %vm303, %v573, %v575
      %v577 = vsel %vm303, %v575, %v573
      %v578 = vsel %vm286, %v577, 0.0
      %v579 = vsel %vm287, %v576, 0.0
      %v580 = vpack.c.bf16 %v578, %v578
      %v581 = vpack.c.bf16 %v579, %v579
      %v584 = vunpack.c.l.b16 %v580
      %v585 = vunpack.c.l.b16 %v581
      %v586 = vpack.c.b16 %v585, %v584
      %588 = vst [vmem:[#allocation2] sm:$0xff] %v586
      %v589 = vpack.c.bf16 %v570, %v570
      %v590 = vpack.c.bf16 %v571, %v571
      %v593 = vunpack.c.l.b16 %v589
      %v594 = vunpack.c.l.b16 %v590
      %v595 = vpack.c.b16 %v594, %v593
      %597 = vst [vmem:[#allocation2 + $0x18] sm:$0xff] %v595
      %598 = vrot.lane.b32.xlu0 %v570, 112
      %v599 = vpop.permute.xlu0 %598
      %600 = vrot.lane.b32.xlu0 %v571, 112
      %v601 = vpop.permute.xlu0 %600
      %v602 = vsel %vm330, %v599, %v601
      %v603 = vsel %vm330, %v601, %v599
      %v604 = vsel %vm288, %v602, 0.0
      %v605 = vsel %vm289, %v603, 0.0
      %v606 = vpack.c.bf16 %v604, %v604
      %v607 = vpack.c.bf16 %v605, %v605
      %v610 = vunpack.c.l.b16 %v606
      %v611 = vunpack.c.l.b16 %v607
      %v612 = vpack.c.b16 %v611, %v610
      %614 = vst [vmem:[#allocation2 + $0x30] sm:$0xff] %v612
      %615 = vrot.lane.b32.xlu0 %v562, 16
      %v616 = vpop.permute.xlu0 %615
      %617 = vrot.lane.b32.xlu0 %v563, 16
      %v618 = vpop.permute.xlu0 %617
      %v619 = vsel %vm303, %v616, %v618
      %v620 = vsel %vm303, %v618, %v616
      %v621 = vsel %vm286, %v620, 0.0
      %v622 = vsel %vm287, %v619, 0.0
      %v623 = vpack.c.bf16 %v621, %v621
      %v624 = vpack.c.bf16 %v622, %v622
      %v627 = vunpack.c.l.b16 %v623
      %v628 = vunpack.c.l.b16 %v624
      %v629 = vpack.c.b16 %v628, %v627
      %631 = vst [vmem:[#allocation2 + $0x8] sm:$0xff] %v629
      %v632 = vpack.c.bf16 %v562, %v562
      %v633 = vpack.c.bf16 %v563, %v563
      %v636 = vunpack.c.l.b16 %v632
      %v637 = vunpack.c.l.b16 %v633
      %v638 = vpack.c.b16 %v637, %v636
      %640 = vst [vmem:[#allocation2 + $0x20] sm:$0xff] %v638
      %641 = vrot.lane.b32.xlu0 %v562, 112
      %v642 = vpop.permute.xlu0 %641
      %643 = vrot.lane.b32.xlu0 %v563, 112
      %v644 = vpop.permute.xlu0 %643
      %v645 = vsel %vm330, %v642, %v644
      %v646 = vsel %vm330, %v644, %v642
      %v647 = vsel %vm288, %v645, 0.0
      %v648 = vsel %vm289, %v646, 0.0
      %v649 = vpack.c.bf16 %v647, %v647
      %v650 = vpack.c.bf16 %v648, %v648
      %v653 = vunpack.c.l.b16 %v649
      %v654 = vunpack.c.l.b16 %v650
      %v655 = vpack.c.b16 %v654, %v653
      %657 = vst [vmem:[#allocation2 + $0x38] sm:$0xff] %v655
      %658 = vrot.lane.b32.xlu0 %v562, 127
      %v659 = vpop.permute.xlu0 %658
      %660 = vrot.lane.b32.xlu0 %v563, 127
      %v661 = vpop.permute.xlu0 %660
      %v662 = vsel %vm391, %v659, %v661
      %v663 = vsel %vm391, %v661, %v659
      %v664 = vsel %vm284, %v662, 0.0
      %v665 = vsel %vm285, %v663, 0.0
      %666 = vrot.lane.b32.xlu0 %v664, 16
      %v667 = vpop.permute.xlu0 %666
      %668 = vrot.lane.b32.xlu0 %v665, 16
      %v669 = vpop.permute.xlu0 %668
      %v670 = vsel %vm303, %v667, %v669
      %v671 = vsel %vm303, %v669, %v667
      %v672 = vsel %vm286, %v671, 0.0
      %v673 = vsel %vm287, %v670, 0.0
      %v674 = vpack.c.bf16 %v672, %v672
      %v675 = vpack.c.bf16 %v673, %v673
      %v678 = vunpack.c.l.b16 %v674
      %v679 = vunpack.c.l.b16 %v675
      %v680 = vpack.c.b16 %v679, %v678
      %682 = vst [vmem:[#allocation2 + $0x10] sm:$0xff] %v680
      %v683 = vpack.c.bf16 %v664, %v664
      %v684 = vpack.c.bf16 %v665, %v665
      %v687 = vunpack.c.l.b16 %v683
      %v688 = vunpack.c.l.b16 %v684
      %v689 = vpack.c.b16 %v688, %v687
      %691 = vst [vmem:[#allocation2 + $0x28] sm:$0xff] %v689
      %692 = vrot.lane.b32.xlu0 %v664, 112
      %v693 = vpop.permute.xlu0 %692
      %694 = vrot.lane.b32.xlu0 %v665, 112
      %v695 = vpop.permute.xlu0 %694
      %v696 = vsel %vm330, %v693, %v695
      %v697 = vsel %vm330, %v695, %v693
      %v698 = vsel %vm288, %v696, 0.0
      %v699 = vsel %vm289, %v697, 0.0
      %v700 = vpack.c.bf16 %v698, %v698
      %v701 = vpack.c.bf16 %v699, %v699
      %v704 = vunpack.c.l.b16 %v700
      %v705 = vunpack.c.l.b16 %v701
      %v706 = vpack.c.b16 %v705, %v704
      %708 = vst [vmem:[#allocation2 + $0x40] sm:$0xff] %v706
      %v709 = vld [vmem:[%s4] sm:$0xf]
      %v710 = vld [vmem:[#allocation2] sm:$0xff]
      %v711 = vld [vmem:[#allocation2 + $0x8] sm:$0xff]
      %v712 = vld [vmem:[#allocation2 + $0x10] sm:$0xff]
      %v713 = vld [vmem:[#allocation2 + $0x18] sm:$0xff]
      %v714 = vld [vmem:[#allocation2 + $0x20] sm:$0xff]
      %v715 = vld [vmem:[#allocation2 + $0x28] sm:$0xff]
      %v716 = vld [vmem:[#allocation2 + $0x30] sm:$0xff]
      %v717 = vld [vmem:[#allocation2 + $0x38] sm:$0xff]
      %v718 = vld [vmem:[#allocation2 + $0x40] sm:$0xff]
      %v719 = vld [vmem:[%s5] sm:$0xff]
      %721 = vset.pattern.permute.xlu0 0
      %722 = vperm.xlu0 %721, %v719
      %v723 = vpop.permute.xlu0 %722
      %v734 = vunpack.c.l.b16 %v710
      %v735 = vunpack.c.h.b16 %v710
      %v736 = vunpack.c.l.b16 %v711
      %v737 = vunpack.c.h.b16 %v711
      %v738 = vunpack.c.l.b16 %v712
      %v739 = vunpack.c.h.b16 %v712
      %v740 = vunpack.c.l.b16 %v713
      %v741 = vunpack.c.h.b16 %v713
      %v742 = vunpack.c.l.b16 %v714
      %v743 = vunpack.c.h.b16 %v714
      %v744 = vunpack.c.l.b16 %v715
      %v745 = vunpack.c.h.b16 %v715
      %v746 = vunpack.c.l.b16 %v716
      %v747 = vunpack.c.h.b16 %v716
      %v748 = vunpack.c.l.b16 %v717
      %v749 = vunpack.c.h.b16 %v717
      %v750 = vunpack.c.l.b16 %v718
      %v751 = vunpack.c.h.b16 %v718
      %v752 = vpack.c.b16 %v736, %v734
      %v753 = vpack.c.b16 %v737, %v735
      %v754 = vpack.c.b16 %v740, %v738
      %v755 = vpack.c.b16 %v741, %v739
      %v756 = vpack.c.b16 %v744, %v742
      %v757 = vpack.c.b16 %v745, %v743
      %v758 = vpack.c.b16 %v748, %v746
      %v759 = vpack.c.b16 %v749, %v747
      %v760 = vpack.c.b16 %v750, %v750
      %v761 = vpack.c.b16 %v751, %v751
      %v771 = vsel %vm500, %v709, 0
      %v774 = vsel %vm504, %v760, 0
      %v777 = vsel %vm504, %v761, 0
      %779 = vmatprep.subr.bf16.mxu0 %v753
      %780 = vmatpush1.bf16.msra.mxu0 %v752
      %781 = vmatprep.subr.bf16.mxu0 %v755
      %782 = vmatpush1.bf16.msra.mxu0 %v754
      %783 = vmatprep.subr.bf16.mxu0 %v757
      %784 = vmatpush1.bf16.msra.mxu0 %v756
      %785 = vmatprep.subr.bf16.mxu0 %v759
      %786 = vmatpush1.bf16.msra.mxu0 %v758
      %787 = vmatprep.subr.bf16.mxu0 %v777
      %788 = vmatpush1.bf16.msra.mxu0 %v774
      %789 = vmatprep.subr.bf16.mxu0 0
      %790 = vmatpush1.bf16.msra.mxu0 0
      %791 = vmatprep.subr.bf16.mxu0 0
      %792 = vmatpush1.bf16.msra.mxu0 0
      %793 = vmatprep.subr.bf16.mxu0 0
      %794 = vmatpush1.bf16.msra.mxu0 0
      %795 = vmatprep.subr.bf16.mxu0 0
      %796 = vmatpush1.bf16.msra.mxu0 0
      %797 = vmatprep.subr.bf16.mxu0 0
      %798 = vmatpush1.bf16.msra.mxu0 0
      %799 = vmatprep.subr.bf16.mxu0 0
      %800 = vmatpush1.bf16.msra.mxu0 0
      %801 = vmatprep.subr.bf16.mxu0 0
      %802 = vmatpush1.bf16.msra.mxu0 0
      %803 = vmatprep.subr.bf16.mxu0 0
      %804 = vmatpush1.bf16.msra.mxu0 0
      %805 = vmatprep.subr.bf16.mxu0 0
      %806 = vmatpush1.bf16.msra.mxu0 0
      %807 = vmatprep.subr.bf16.mxu0 0
      %808 = vmatpush1.bf16.msra.mxu0 0
      %809 = vmatprep.subr.bf16.mxu0 0
      %810 = vmatpush1.bf16.msra.mxu0 0
      %811 = vmatprep.mubr.bf16.mxu0 0
      %812 = vmatmul.mubr.bf16.gmra.mrb[0].mxu0 %v771
      %v813 = vpop.f32.mrb[0].mxu0
      %v814 = vadd.f32 %v723, %v813
      %v815 = vpop.f32.mrb[0].mxu0
      %v816 = vadd.f32 %v723, %v815
      %v817 = vpop.f32.mrb[0].mxu0
      %v818 = vpop.f32.mrb[0].mxu0
      %819 = vdwg.mxu0
      %v820 = vadd.f32 %v814, %v253
      %v821 = vadd.f32 %v816, %v254
      %822 = vst [vmem:[%s251] sm:$0xff] %v820
      %823 = vst [vmem:[%s251 + $0x8] sm:$0xff] %v821
      %p824 = scmp.lt.s32.totalorder %s17, 1
      %s825 = scalar_select %p824, %s17, 1
      %s826 = smul.addr %s825, 2
      %s827 = smul.addr %s826, 8
      %s828 = scalar_lea.vmem %s6, %s827
      // Predicated region
      $region45: #{residual_block.1} parent=43 // pred_check
        %p829 = pneg %p166
      $region46: #{residual_block.1} parent=43 // pred_check_branch
        %831 = sbr.rel (%p829) target = $region48
      $region47: #{residual_block.1} parent=43 // pred_region
        _
      $region48: #{residual_block.1} parent=43 // pred_fallthru
        _
    $region44: #{residual_block.1} parent=5 // pred_fallthru
      _
    %p832 = scmp.le.s32.totalorder 2, %s12
    // Predicated region
    $region49: #{residual_block.1} parent=5 // pred_check
      %p833 = pneg %p832
    $region50: #{residual_block.1} parent=5 // pred_check_branch
      %835 = sbr.rel (%p833) target = $region52
    $region51: #{residual_block.1} parent=5 // pred_region
      %s836 = ssub.s32 %s12, 2
      // Predicated region
      $region53: #{residual_block.1} parent=51 // pred_check
        %p837 = pneg %p172
      $region54: #{residual_block.1} parent=51 // pred_check_branch
        %839 = sbr.rel (%p837) target = $region56
      $region55: #{residual_block.1} parent=51 // pred_region
        %p840 = scmp.lt.s32.totalorder %s18, 1
        %s841 = scalar_select %p840, %s18, 1
        %s842 = smul.addr %s841, 2
        %s843 = smul.addr %s842, 8
        %s844 = scalar_lea.vmem %s6, %s843
      $region56: #{residual_block.1} parent=51 // pred_fallthru
        _
    $region52: #{residual_block.1} parent=5 // pred_fallthru
      _
  $region6: #{residual_block.1} parent=0 // loop_footer
    %s16 = sadd.s32 1, %s12
  $region7: #{residual_block.1} parent=0 // loop_footer_branch
    %11 = sbr.rel target = $region3
  $region8: #{residual_block.1} parent=0 // loop_exit
    _

</llo_original>
